<compile_context>
chip_gen: v5e
topology: v5e:2x2
jax: 0.10.0
libtpu: 0.0.40
codegen_flags: <defaults>
</compile_context>

<pallas_src>
import functools

import jax
import jax.numpy as jnp
from jax.experimental import pallas as pl
from jax.experimental.pallas import tpu as pltpu


def _round_up(n: int, m: int) -> int:
    return ((n + m - 1) // m) * m


def _cdiv(a: int, b: int) -> int:
    return (a + b - 1) // b


def _mlp_kernel(x_ref, w1_ref, b1_ref, w2_ref, b2_ref, o_ref, *, mxu_precision):
    # In-kernel cast of x to the MXU dtype (review item 1): VPU work hidden
    # under the x DMA, no extra HBM traffic.
    x = x_ref[...].astype(w1_ref.dtype)
    h = jnp.dot(x, w1_ref[...], preferred_element_type=jnp.float32,
                precision=mxu_precision)
    h = jnp.maximum(h + b1_ref[...], 0.0)                    # bias + ReLU in f32
    out = jnp.dot(h.astype(w2_ref.dtype), w2_ref[...],
                  preferred_element_type=jnp.float32, precision=mxu_precision)
    o_ref[...] = (out + b2_ref[...]).astype(o_ref.dtype)


@functools.partial(jax.jit,
                   static_argnames=("block_batch", "compute_dtype", "out_dtype"))
def embedding_net_forward_pallas(x, w1, b1, w2, b2, *, block_batch=8192,
                                 compute_dtype=jnp.bfloat16,
                                 out_dtype=jnp.float32):
    """x: (B, input_dim) -> (B, embed_dim), fused lane-dense Pallas kernel."""
    B, D = x.shape
    H = w1.shape[1]
    E = w2.shape[1]

    # ---- lane-dense "super-row" formulation (review item 6) ----------------
    # Group 8 rows of x along the lane axis: (B, D) -> (B/8, 8*D)   (free).
    # W1/W2 become 8-way block-diagonal so lane segment j of a super-row uses
    # its own copy of the weights; biases are tiled 8x along lanes.  The
    # (B/8, 8*E) output (128 lanes for E=16) is reshaped back to (B, E) free.
    pad = (-B) % 8
    if pad:                     # only for B not a multiple of 8: minimal 8-row pad
        x = jnp.pad(x, ((0, pad), (0, 0)))
    Bp = B + pad
    R = Bp // 8                 # number of super-rows

    xr = x.reshape(R, 8 * D)    # bitcast-equivalent reshape, no copy

    eye8 = jnp.eye(8, dtype=jnp.float32)
    w1_bd = jnp.kron(eye8, w1.astype(jnp.float32)).astype(compute_dtype)  # (8D, 8H)
    w2_bd = jnp.kron(eye8, w2.astype(jnp.float32)).astype(compute_dtype)  # (8H, 8E)
    b1_bd = jnp.tile(b1.astype(jnp.float32), 8).reshape(1, 8 * H)
    b2_bd = jnp.tile(b2.astype(jnp.float32), 8).reshape(1, 8 * E)

    # ---- super-row batch tile (review items 3/4/5) --------------------------
    isz = lambda dt: jnp.dtype(dt).itemsize
    tbr = max(8, min(block_batch // 8, _round_up(R, 8)))
    tbr = _round_up(tbr, 8)

    resident = ((8 * D) * (8 * H) + (8 * H) * (8 * E)) * isz(compute_dtype) \
               + (8 * H + 8 * E) * 4

    def tile_vmem(t):
        io = 2 * t * 8 * (D * isz(x.dtype) + E * isz(out_dtype))   # dbl-buffered x/out
        tmp = t * 8 * (H * 4 + D * isz(compute_dtype))             # h (f32) + cast x
        return io + tmp

    while tbr > 8 and tile_vmem(tbr) + resident > (48 << 20):       # stay inside v7x VMEM
        tbr = max(8, _round_up(tbr // 2, 8))

    if _cdiv(R, tbr) < 2 and R > 8:   # keep >=2 grid steps for pipelining / 2 TCs
        tbr = _round_up(_cdiv(R, 2), 8)
    n_steps = _cdiv(R, tbr)           # ragged last block handled by Pallas masking

    vmem_bytes = int(min(max(tile_vmem(tbr) + resident + (4 << 20), 16 << 20),
                         64 << 20))

    mxu_precision = (jax.lax.Precision.HIGHEST
                     if jnp.dtype(compute_dtype) == jnp.dtype(jnp.float32)
                     else None)
    kernel = functools.partial(_mlp_kernel, mxu_precision=mxu_precision)

    out = pl.pallas_call(
        kernel,
        out_shape=jax.ShapeDtypeStruct((R, 8 * E), out_dtype),
        grid_spec=pltpu.PrefetchScalarGridSpec(
            num_scalar_prefetch=0,
            grid=(n_steps,),
            in_specs=[
                pl.BlockSpec((tbr, 8 * D), lambda i: (i, 0)),    # x super-rows: streamed
                pl.BlockSpec((8 * D, 8 * H), lambda i: (0, 0)),  # W1 blockdiag: resident
                pl.BlockSpec((1, 8 * H), lambda i: (0, 0)),      # b1 lane-tiled: resident
                pl.BlockSpec((8 * H, 8 * E), lambda i: (0, 0)),  # W2 blockdiag: resident
                pl.BlockSpec((1, 8 * E), lambda i: (0, 0)),      # b2 lane-tiled: resident
            ],
            out_specs=pl.BlockSpec((tbr, 8 * E), lambda i: (i, 0)),
        ),
        compiler_params=pltpu.CompilerParams(
            dimension_semantics=("parallel",),   # batch axis megacore-shardable
            vmem_limit_bytes=vmem_bytes,
        ),
    )(xr, w1_bd, b1_bd, w2_bd, b2_bd)

    out = out.reshape(Bp, E)          # free row-major reshape back to per-row layout
    if pad:
        out = out[:B]                 # only when B was not a multiple of 8
    return out


def embedding_net_forward(x, w1, b1, w2, b2, *, block_batch=8192,
                          compute_dtype=jnp.bfloat16, out_dtype=jnp.float32,
                          min_pallas_batch=1024):
    """EmbeddingNet forward.  Small batches fall back to fused XLA matmuls."""
    lead = x.shape[:-1]
    x2 = x.reshape(-1, x.shape[-1])
    B = x2.shape[0]
    if B < min_pallas_batch:
        # Launch + DMA setup dwarfs ~50K FLOPs at tiny B; let XLA fuse it.
        h = jnp.maximum(x2 @ w1 + b1, 0.0)
        out = (h @ w2 + b2).astype(out_dtype)
    else:
        out = embedding_net_forward_pallas(
            x2, w1, b1, w2, b2, block_batch=block_batch,
            compute_dtype=compute_dtype, out_dtype=out_dtype)
    return out.reshape(*lead, w2.shape[1])


def init_params(key, input_dim, embed_dim=16, hidden=64):
    """Deterministic PyTorch-style (Kaiming-uniform-ish) init, (in, out) layout."""
    k1, k2, k3, k4 = jax.random.split(key, 4)
    bound1 = 1.0 / jnp.sqrt(input_dim)
    bound2 = 1.0 / jnp.sqrt(hidden)
    w1 = jax.random.uniform(k1, (input_dim, hidden), jnp.float32, -bound1, bound1)
    b1 = jax.random.uniform(k2, (hidden,), jnp.float32, -bound1, bound1)
    w2 = jax.random.uniform(k3, (hidden, embed_dim), jnp.float32, -bound2, bound2)
    b2 = jax.random.uniform(k4, (embed_dim,), jnp.float32, -bound2, bound2)
    return w1, b1, w2, b2


if __name__ == "__main__":
    key = jax.random.PRNGKey(0)
    k_in, k_params = jax.random.split(key)

    batch = 264          # multiple of 8 -> no pad copy; 33 super-rows -> ragged 2-step grid
    input_dim = 32
    embed_dim = 16

    x = jax.random.normal(k_in, (batch, input_dim), jnp.float32)
    w1, b1, w2, b2 = init_params(k_params, input_dim, embed_dim)

    def ref_forward(xq):
        # Reference applying the same bf16 rounding the kernel applies; only
        # accumulation order then differs (kernel also adds exact zeros from
        # the block-diagonal, which do not change the sums).
        f32 = jnp.float32
        hi = jax.lax.Precision.HIGHEST
        xb = xq.astype(jnp.bfloat16).astype(f32)
        w1b = w1.astype(jnp.bfloat16).astype(f32)
        w2b = w2.astype(jnp.bfloat16).astype(f32)
        h = jnp.maximum(jnp.dot(xb, w1b, precision=hi) + b1, 0.0)
        return jnp.dot(h.astype(jnp.bfloat16).astype(f32), w2b, precision=hi) + b2

    # Pallas path (min_pallas_batch overridden so the small demo batch uses it;
    # production default keeps tiny batches on the XLA fallback).
    out = embedding_net_forward(x, w1, b1, w2, b2,
                                block_batch=256, min_pallas_batch=64)
    out = jax.block_until_ready(out)
    assert out.shape == (batch, embed_dim)
    assert out.dtype == jnp.float32
    ref = ref_forward(x)
    assert jnp.allclose(out, ref, atol=5e-3, rtol=5e-3), (
        "mismatch vs reference, max abs diff = "
        + str(float(jnp.max(jnp.abs(out - ref)))))

    # Non-multiple-of-8 batch -> exercises the minimal 8-row pad + slice path.
    x_odd = x[:250]
    out_odd = jax.block_until_ready(
        embedding_net_forward(x_odd, w1, b1, w2, b2,
                              block_batch=256, min_pallas_batch=64))
    assert out_odd.shape == (250, embed_dim)
    ref_odd = ref_forward(x_odd)
    assert jnp.allclose(out_odd, ref_odd, atol=5e-3, rtol=5e-3)

    # Tiny batch -> pure-XLA fallback (default min_pallas_batch=1024).
    out_small = jax.block_until_ready(
        embedding_net_forward(x[:8], w1, b1, w2, b2))
    assert out_small.shape == (8, embed_dim)

    print("KERNEL_OK")
</pallas_src>

<mosaic_0001>
module attributes {stable_mosaic.version = 11 : i64} {
  func.func @_mlp_kernel(%arg0: i32, %arg1: memref<32x256xf32, #tpu.memory_space<vmem>>, %arg2: memref<256x512xbf16, #tpu.memory_space<vmem>>, %arg3: memref<1x512xf32, #tpu.memory_space<vmem>>, %arg4: memref<512x128xbf16, #tpu.memory_space<vmem>>, %arg5: memref<1x128xf32, #tpu.memory_space<vmem>>, %arg6: memref<32x128xf32, #tpu.memory_space<vmem>>) attributes {dimension_semantics = [#tpu.dimension_semantics<parallel>], iteration_bounds = array<i64: 2>, scalar_prefetch = 0 : i64, scratch_operands = 0 : i64, tpu.core_type = #tpu.core_type<tc>, window_params = [{transform_indices = @transform_0, window_bounds = array<i64: 32, 256>}, {pipeline_mode = #tpu.pipeline_mode<synchronous>, transform_indices = @transform_1, window_bounds = array<i64: 256, 512>}, {pipeline_mode = #tpu.pipeline_mode<synchronous>, transform_indices = @transform_2, window_bounds = array<i64: 1, 512>}, {pipeline_mode = #tpu.pipeline_mode<synchronous>, transform_indices = @transform_3, window_bounds = array<i64: 512, 128>}, {pipeline_mode = #tpu.pipeline_mode<synchronous>, transform_indices = @transform_4, window_bounds = array<i64: 1, 128>}, {transform_indices = @transform_5, window_bounds = array<i64: 32, 128>}]} {
    %c0 = arith.constant 0 : index
    %c0_0 = arith.constant 0 : index
    %0 = vector.load %arg1[%c0, %c0_0] : memref<32x256xf32, #tpu.memory_space<vmem>>, vector<32x256xf32>
    %1 = arith.truncf %0 : vector<32x256xf32> to vector<32x256xbf16>
    %c0_1 = arith.constant 0 : index
    %c0_2 = arith.constant 0 : index
    %2 = vector.load %arg2[%c0_1, %c0_2] : memref<256x512xbf16, #tpu.memory_space<vmem>>, vector<256x512xbf16>
    %cst = arith.constant dense<0.000000e+00> : vector<32x512xf32>
    %3 = tpu.matmul %1, %2, %cst {dimension_numbers = #tpu.dot_dimension_numbers<[1], [0], [0], [1], [0, 0, 1, 1], [], []>} : vector<32x256xbf16>, vector<256x512xbf16>, vector<32x512xf32> -> vector<32x512xf32>
    %c0_3 = arith.constant 0 : index
    %c0_4 = arith.constant 0 : index
    %4 = vector.load %arg3[%c0_3, %c0_4] : memref<1x512xf32, #tpu.memory_space<vmem>>, vector<1x512xf32>
    %5 = vector.broadcast %4 : vector<1x512xf32> to vector<32x512xf32>
    %6 = arith.addf %3, %5 : vector<32x512xf32>
    %cst_5 = arith.constant 0.000000e+00 : f32
    %7 = vector.broadcast %cst_5 : f32 to vector<32x512xf32>
    %8 = arith.maximumf %6, %7 : vector<32x512xf32>
    %9 = arith.truncf %8 : vector<32x512xf32> to vector<32x512xbf16>
    %c0_6 = arith.constant 0 : index
    %c0_7 = arith.constant 0 : index
    %10 = vector.load %arg4[%c0_6, %c0_7] : memref<512x128xbf16, #tpu.memory_space<vmem>>, vector<512x128xbf16>
    %cst_8 = arith.constant dense<0.000000e+00> : vector<32x128xf32>
    %11 = tpu.matmul %9, %10, %cst_8 {dimension_numbers = #tpu.dot_dimension_numbers<[1], [0], [0], [1], [0, 0, 1, 1], [], []>} : vector<32x512xbf16>, vector<512x128xbf16>, vector<32x128xf32> -> vector<32x128xf32>
    %c0_9 = arith.constant 0 : index
    %c0_10 = arith.constant 0 : index
    %12 = vector.load %arg5[%c0_9, %c0_10] : memref<1x128xf32, #tpu.memory_space<vmem>>, vector<1x128xf32>
    %13 = vector.broadcast %12 : vector<1x128xf32> to vector<32x128xf32>
    %14 = arith.addf %11, %13 : vector<32x128xf32>
    %c0_11 = arith.constant 0 : index
    %c0_12 = arith.constant 0 : index
    %15 = vector.load %arg6[%c0_11, %c0_12] : memref<32x128xf32, #tpu.memory_space<vmem>>, vector<32x128xf32>
    tpu.vector_store %arg6[%c0_11, %c0_12], %14 {strides = array<i32>} : memref<32x128xf32, #tpu.memory_space<vmem>>, vector<32x128xf32>,
    return
  }
  func.func @transform_0(%arg0: i32) -> (i32, i32) {
    %c0_i32 = arith.constant 0 : i32
    %c0_i32_0 = arith.constant 0 : i32
    return %arg0, %c0_i32 : i32, i32
  }
  func.func @transform_1(%arg0: i32) -> (i32, i32) {
    %c0_i32 = arith.constant 0 : i32
    %c0_i32_0 = arith.constant 0 : i32
    %c0_i32_1 = arith.constant 0 : i32
    return %c0_i32, %c0_i32_0 : i32, i32
  }
  func.func @transform_2(%arg0: i32) -> (i32, i32) {
    %c0_i32 = arith.constant 0 : i32
    %c0_i32_0 = arith.constant 0 : i32
    %c0_i32_1 = arith.constant 0 : i32
    return %c0_i32, %c0_i32_0 : i32, i32
  }
  func.func @transform_3(%arg0: i32) -> (i32, i32) {
    %c0_i32 = arith.constant 0 : i32
    %c0_i32_0 = arith.constant 0 : i32
    %c0_i32_1 = arith.constant 0 : i32
    return %c0_i32, %c0_i32_0 : i32, i32
  }
  func.func @transform_4(%arg0: i32) -> (i32, i32) {
    %c0_i32 = arith.constant 0 : i32
    %c0_i32_0 = arith.constant 0 : i32
    %c0_i32_1 = arith.constant 0 : i32
    return %c0_i32, %c0_i32_0 : i32, i32
  }
  func.func @transform_5(%arg0: i32) -> (i32, i32) {
    %c0_i32 = arith.constant 0 : i32
    %c0_i32_0 = arith.constant 0 : i32
    return %arg0, %c0_i32 : i32, i32
  }
}

</mosaic_0001>

<llo_original>
// kernel: tile.13
$region0: #{tile.13}
  #allocation0 [shape = 's32[1]{0}', space=sflag, size = 0x4, scoped, tag = 'scoped memory for tile.13']
  %s0 = inlined_call_operand.vmem [shape: f32[64], index: 0, kind: input, shape index: {}]
  %s1 = inlined_call_operand.vmem [shape: f32[8,64], index: 1, kind: output, shape index: {}]
  // Predicated region
  $region2: #{tile.13} parent=0 // pred_check
    _
  $region3: #{tile.13} parent=0 // pred_check_branch
    %3 = sbr.rel (0) target = $region5
  $region4: #{tile.13} parent=0 // pred_region
    _
  $region5: #{tile.13} parent=0 // pred_fallthru
    _
  %v4 = vld [vmem:[%s0] ss:$0 sm:$0xff]
  %5 = vst [vmem:[%s1] sm:$0xff] %v4

// kernel: tile.14
$region0: #{tile.14}
  %s0 = inlined_call_operand.vmem [shape: f32[8,64], index: 0, kind: input, shape index: {}]
  %s1 = inlined_call_operand.vmem [shape: f32[1,512], index: 1, kind: output, shape index: {}]
  $region1: #{tile.14} parent=0
    #allocation0 [shape = 'u8[16384]{0}', space=vmem, size = 0x4000, scoped, tag = 'scoped mem for output reshape']
    %v2 = vld [vmem:[%s0] ss:$2 sm:$0xf]
    %vm3 = vcmask 523264
    %4 = vst.msk [vmem:[#allocation0] ss:$8 sm:$0xf] %vm3, %v2
    %s5 = scalar_lea.vmem %s0, 1
    %v6 = vld [vmem:[%s5] ss:$2 sm:$0xf]
    %7 = vrot.lane.b32.xlu0 %v6, 64
    %v8 = vpop.permute.xlu0 %7
    %vm9 = vcmask 1048064
    %10 = vst.msk [vmem:[#allocation0] ss:$8 sm:$0xf] %vm9, %v8
    %s12 = ssub.s32 2, 1
    %v13 = vld [vmem:[#allocation0] sm:%s12]
    %s15 = ssub.s32 2, 1
    %16 = vst [vmem:[%s1] sm:%s15] %v13
    %s17 = scalar_lea.vmem [#allocation0], 8
    %v18 = vld [vmem:[%s17] sm:%s12]
    %s20 = ssub.s32 2, 1
    %s21 = scalar_lea.vmem %s1, 1
    %22 = vst [vmem:[%s21] sm:%s20] %v18
    %s23 = scalar_lea.vmem [#allocation0], 16
    %v24 = vld [vmem:[%s23] sm:%s12]
    %s26 = ssub.s32 2, 1
    %s27 = scalar_lea.vmem %s1, 2
    %28 = vst [vmem:[%s27] sm:%s26] %v24
    %s29 = scalar_lea.vmem [#allocation0], 24
    %v30 = vld [vmem:[%s29] sm:%s12]
    %s32 = ssub.s32 2, 1
    %s33 = scalar_lea.vmem %s1, 3
    %34 = vst [vmem:[%s33] sm:%s32] %v30

// kernel: tile.18
$region0: #{tile.18}
  #allocation0 [shape = 's32[1]{0}', space=sflag, size = 0x4, scoped, tag = 'scoped memory for tile.18']
  %s0 = inlined_call_operand.vmem [shape: f32[16], index: 0, kind: input, shape index: {}]
  %s1 = inlined_call_operand.vmem [shape: f32[8,16], index: 1, kind: output, shape index: {}]
  // Predicated region
  $region2: #{tile.18} parent=0 // pred_check
    _
  $region3: #{tile.18} parent=0 // pred_check_branch
    %3 = sbr.rel (0) target = $region5
  $region4: #{tile.18} parent=0 // pred_region
    _
  $region5: #{tile.18} parent=0 // pred_fallthru
    _
  %v4 = vld [vmem:[%s0] ss:$0 sm:$0xff]
  %5 = vst [vmem:[%s1] sm:$0xff] %v4

// kernel: tile.19
$region0: #{tile.19}
  %s0 = inlined_call_operand.vmem [shape: f32[8,16], index: 0, kind: input, shape index: {}]
  %s1 = inlined_call_operand.vmem [shape: f32[1,128], index: 1, kind: output, shape index: {}]
  $region1: #{tile.19} parent=0
    #allocation0 [shape = 'u8[4096]{0}', space=vmem, size = 0x1000, scoped, tag = 'scoped mem for output reshape']
    %v2 = vld [vmem:[%s0] sm:$0x1]
    %vm3 = vcmask 130048
    %4 = vst.msk [vmem:[#allocation0] sm:$0x1] %vm3, %v2
    %s5 = scalar_lea.vmem %s0, 7
    %v6 = vld [vmem:[%s5] sm:$0x1]
    %7 = vrot.lane.b32.xlu0 %v6, 112
    %v8 = vpop.permute.xlu0 %7
    %vm9 = vcmask 1048448
    %10 = vst.msk [vmem:[#allocation0] sm:$0x1] %vm9, %v8
    %s11 = scalar_lea.vmem %s0, 6
    %v12 = vld [vmem:[%s11] sm:$0x1]
    %13 = vrot.lane.b32.xlu0 %v12, 96
    %v14 = vpop.permute.xlu0 %13
    %vm15 = vcmask 917248
    %16 = vst.msk [vmem:[#allocation0] sm:$0x1] %vm15, %v14
    %s17 = scalar_lea.vmem %s0, 5
    %v18 = vld [vmem:[%s17] sm:$0x1]
    %19 = vrot.lane.b32.xlu0 %v18, 80
    %v20 = vpop.permute.xlu0 %19
    %vm21 = vcmask 786048
    %22 = vst.msk [vmem:[#allocation0] sm:$0x1] %vm21, %v20
    %s23 = scalar_lea.vmem %s0, 4
    %v24 = vld [vmem:[%s23] sm:$0x1]
    %25 = vrot.lane.b32.xlu0 %v24, 64
    %v26 = vpop.permute.xlu0 %25
    %vm27 = vcmask 654848
    %28 = vst.msk [vmem:[#allocation0] sm:$0x1] %vm27, %v26
    %s29 = scalar_lea.vmem %s0, 3
    %v30 = vld [vmem:[%s29] sm:$0x1]
    %31 = vrot.lane.b32.xlu0 %v30, 48
    %v32 = vpop.permute.xlu0 %31
    %vm33 = vcmask 523648
    %34 = vst.msk [vmem:[#allocation0] sm:$0x1] %vm33, %v32
    %s35 = scalar_lea.vmem %s0, 2
    %v36 = vld [vmem:[%s35] sm:$0x1]
    %37 = vrot.lane.b32.xlu0 %v36, 32
    %v38 = vpop.permute.xlu0 %37
    %vm39 = vcmask 392448
    %40 = vst.msk [vmem:[#allocation0] sm:$0x1] %vm39, %v38
    %s41 = scalar_lea.vmem %s0, 1
    %v42 = vld [vmem:[%s41] sm:$0x1]
    %43 = vrot.lane.b32.xlu0 %v42, 16
    %v44 = vpop.permute.xlu0 %43
    %vm45 = vcmask 261248
    %46 = vst.msk [vmem:[#allocation0] sm:$0x1] %vm45, %v44
    %s48 = ssub.s32 2, 1
    %v49 = vld [vmem:[#allocation0] sm:%s48]
    %s51 = ssub.s32 2, 1
    %52 = vst [vmem:[%s1] sm:%s51] %v49

// kernel: embedding_net_forward_pallas.1
$region0: #{embedding_net_forward_pallas.1}
  #allocation0 [shape = 'u32[]', space=smem, size = 0x4, offset = 0x4, fixed_abs, tag = 'smem constant byte address 0x4 - core index']
  #allocation1 [shape = 'u32[72,128]{1,0:T(1,128)}', space=vmem, size = 0x9000, scoped, tag = 'internal scratch']
  %s0 = inlined_call_operand.vmem [shape: f32[33,256], index: 0, kind: input, shape index: {}]
  %s1 = inlined_call_operand.vmem [shape: bf16[256,512], index: 1, kind: input, shape index: {}]
  %s2 = inlined_call_operand.vmem [shape: f32[1,512], index: 2, kind: input, shape index: {}]
  %s3 = inlined_call_operand.vmem [shape: bf16[512,128], index: 3, kind: input, shape index: {}]
  %s4 = inlined_call_operand.vmem [shape: f32[1,128], index: 4, kind: input, shape index: {}]
  %s5 = inlined_call_operand.vmem [shape: f32[33,128], index: 5, kind: output, shape index: {}]
  %s6 = sld [smem:[#allocation0]]
  $region101: #{embedding_net_forward_pallas.1} parent=0
    _
  %s8 = ssub.s32 1, %s6
  %s9 = scalar_select 0, %s8, %s6
  $region1: #{embedding_net_forward_pallas.1} parent=0
    #allocation2 [shape = 'u8[32768]{0}', space=vmem, size = 0x8000, scoped, tag = 'output window, operand 0']
    loop: start=0, step=1, limit=4
    $region2: #{embedding_net_forward_pallas.1} parent=1 // loop_pre_header
      _
    $region3: #{embedding_net_forward_pallas.1} parent=1 // loop_header
      %s11 = sphi 0, %s15
      %p12 = scmp.ge.s32.totalorder %s11, 4
      %s21 = sphi 0, %s23
      %s24 = sphi 0, %s21
      %s25 = sphi 0, %s24
      %s41 = sphi 0, %s25
      %s45 = sphi 0, %s45
      %s47 = sphi 0, %s45
      %s48 = sphi 0, %s47
      %s62 = sphi 0, %s48
      %s66 = sphi 0, %s66
      %s68 = sphi 0, %s66
      %s69 = sphi 0, %s68
      %s83 = sphi 0, %s69
      %s87 = sphi 0, %s87
      %s89 = sphi 0, %s87
      %s90 = sphi 0, %s89
      %s104 = sphi 0, %s90
      %s108 = sphi 0, %s108
      %s110 = sphi 0, %s108
      %s111 = sphi 0, %s110
      %s125 = sphi 0, %s111
      %s131 = sphi 0, %s133
      %s134 = sphi 0, %s131
      %s135 = sphi 0, %s134
      %s151 = sphi 0, %s135
    $region4: #{embedding_net_forward_pallas.1} parent=1 // loop_header_branch
      %14 = sbr.rel (%p12) target = $region8
    $region5: #{embedding_net_forward_pallas.1} parent=1 // loop_body
      %s16 = ssub.s32 %s11, 1
      %s17 = ssub.s32 %s11, 2
      %s18 = sadd.s32 %s11, 1
      %s19 = ssub.s32 %s11, %s18
      %p20 = scmp.eq.s32.totalorder %s19, 0
      %s22 = sadd.s32 %s21, 1
      %s23 = scalar_select %p20, %s21, %s22
      %p26 = pneg %p20
      %p27 = scmp.eq.s32.totalorder %s11, 1
      %p28 = por %p26, %p27
      %p29 = scmp.ne.s32.totalorder %s21, %s24
      %p30 = scmp.eq.s32.totalorder %s11, 0
      %p31 = por %p29, %p30
      %p32 = scmp.ne.s32.totalorder %s21, %s24
      %p33 = scmp.eq.s32.totalorder %s16, 1
      %p34 = por %p32, %p33
      %p35 = scmp.ne.s32.totalorder %s24, %s25
      %p36 = scmp.eq.s32.totalorder %s16, 0
      %p37 = por %p35, %p36
      %p38 = scmp.ne.s32.totalorder %s24, %s25
      %p39 = scmp.eq.s32.totalorder %s17, 1
      %p40 = por %p38, %p39
      %p42 = scmp.ne.s32.totalorder %s25, %s41
      %p43 = scmp.eq.s32.totalorder %s17, 0
      %p44 = por %p42, %p43
      %s46 = sadd.s32 %s45, 1
      %p49 = scmp.eq.s32.totalorder %s11, 1
      %p50 = scmp.ne.s32.totalorder %s45, %s47
      %p51 = scmp.eq.s32.totalorder %s11, 0
      %p52 = por %p50, %p51
      %p53 = scmp.ne.s32.totalorder %s45, %s47
      %p54 = scmp.eq.s32.totalorder %s16, 1
      %p55 = por %p53, %p54
      %p56 = scmp.ne.s32.totalorder %s47, %s48
      %p57 = scmp.eq.s32.totalorder %s16, 0
      %p58 = por %p56, %p57
      %p59 = scmp.ne.s32.totalorder %s47, %s48
      %p60 = scmp.eq.s32.totalorder %s17, 1
      %p61 = por %p59, %p60
      %p63 = scmp.ne.s32.totalorder %s48, %s62
      %p64 = scmp.eq.s32.totalorder %s17, 0
      %p65 = por %p63, %p64
      %s67 = sadd.s32 %s66, 1
      %p70 = scmp.eq.s32.totalorder %s11, 1
      %p71 = scmp.ne.s32.totalorder %s66, %s68
      %p72 = scmp.eq.s32.totalorder %s11, 0
      %p73 = por %p71, %p72
      %p74 = scmp.ne.s32.totalorder %s66, %s68
      %p75 = scmp.eq.s32.totalorder %s16, 1
      %p76 = por %p74, %p75
      %p77 = scmp.ne.s32.totalorder %s68, %s69
      %p78 = scmp.eq.s32.totalorder %s16, 0
      %p79 = por %p77, %p78
      %p80 = scmp.ne.s32.totalorder %s68, %s69
      %p81 = scmp.eq.s32.totalorder %s17, 1
      %p82 = por %p80, %p81
      %p84 = scmp.ne.s32.totalorder %s69, %s83
      %p85 = scmp.eq.s32.totalorder %s17, 0
      %p86 = por %p84, %p85
      %s88 = sadd.s32 %s87, 1
      %p91 = scmp.eq.s32.totalorder %s11, 1
      %p92 = scmp.ne.s32.totalorder %s87, %s89
      %p93 = scmp.eq.s32.totalorder %s11, 0
      %p94 = por %p92, %p93
      %p95 = scmp.ne.s32.totalorder %s87, %s89
      %p96 = scmp.eq.s32.totalorder %s16, 1
      %p97 = por %p95, %p96
      %p98 = scmp.ne.s32.totalorder %s89, %s90
      %p99 = scmp.eq.s32.totalorder %s16, 0
      %p100 = por %p98, %p99
      %p101 = scmp.ne.s32.totalorder %s89, %s90
      %p102 = scmp.eq.s32.totalorder %s17, 1
      %p103 = por %p101, %p102
      %p105 = scmp.ne.s32.totalorder %s90, %s104
      %p106 = scmp.eq.s32.totalorder %s17, 0
      %p107 = por %p105, %p106
      %s109 = sadd.s32 %s108, 1
      %p112 = scmp.eq.s32.totalorder %s11, 1
      %p113 = scmp.ne.s32.totalorder %s108, %s110
      %p114 = scmp.eq.s32.totalorder %s11, 0
      %p115 = por %p113, %p114
      %p116 = scmp.ne.s32.totalorder %s108, %s110
      %p117 = scmp.eq.s32.totalorder %s16, 1
      %p118 = por %p116, %p117
      %p119 = scmp.ne.s32.totalorder %s110, %s111
      %p120 = scmp.eq.s32.totalorder %s16, 0
      %p121 = por %p119, %p120
      %p122 = scmp.ne.s32.totalorder %s110, %s111
      %p123 = scmp.eq.s32.totalorder %s17, 1
      %p124 = por %p122, %p123
      %p126 = scmp.ne.s32.totalorder %s111, %s125
      %p127 = scmp.eq.s32.totalorder %s17, 0
      %p128 = por %p126, %p127
      %s129 = ssub.s32 %s11, %s18
      %p130 = scmp.eq.s32.totalorder %s129, 0
      %s132 = sadd.s32 %s131, 1
      %s133 = scalar_select %p130, %s131, %s132
      %p136 = pneg %p130
      %p137 = scmp.eq.s32.totalorder %s11, 1
      %p138 = por %p136, %p137
      %p139 = scmp.ne.s32.totalorder %s131, %s134
      %p140 = scmp.eq.s32.totalorder %s11, 0
      %p141 = por %p139, %p140
      %p142 = scmp.ne.s32.totalorder %s131, %s134
      %p143 = scmp.eq.s32.totalorder %s16, 1
      %p144 = por %p142, %p143
      %p145 = scmp.ne.s32.totalorder %s134, %s135
      %p146 = scmp.eq.s32.totalorder %s16, 0
      %p147 = por %p145, %p146
      %p148 = scmp.ne.s32.totalorder %s134, %s135
      %p149 = scmp.eq.s32.totalorder %s17, 1
      %p150 = por %p148, %p149
      %p152 = scmp.ne.s32.totalorder %s135, %s151
      %p153 = scmp.eq.s32.totalorder %s17, 0
      %p154 = por %p152, %p153
      %p155 = scmp.le.s32.totalorder 1, %s11
      %p156 = scmp.lt.s32.totalorder %s11, 3
      %p157 = pnand %p155, %p156
      %p158 = pneg %p157
      // Predicated region
      $region9: #{embedding_net_forward_pallas.1} parent=5 // pred_check
        _
      $region10: #{embedding_net_forward_pallas.1} parent=5 // pred_check_branch
        %160 = sbr.rel (%p157) target = $region12
      $region11: #{embedding_net_forward_pallas.1} parent=5 // pred_region
        %s161 = ssub.s32 %s11, 1
        // Predicated region
        $region13: #{embedding_net_forward_pallas.1} parent=11 // pred_check
          %p162 = pneg %p58
        $region14: #{embedding_net_forward_pallas.1} parent=11 // pred_check_branch
          %164 = sbr.rel (%p162) target = $region16
        $region15: #{embedding_net_forward_pallas.1} parent=11 // pred_region
          _
        $region16: #{embedding_net_forward_pallas.1} parent=11 // pred_fallthru
          _
        // Predicated region
        $region17: #{embedding_net_forward_pallas.1} parent=11 // pred_check
          %p165 = pneg %p79
        $region18: #{embedding_net_forward_pallas.1} parent=11 // pred_check_branch
          %167 = sbr.rel (%p165) target = $region20
        $region19: #{embedding_net_forward_pallas.1} parent=11 // pred_region
          _
        $region20: #{embedding_net_forward_pallas.1} parent=11 // pred_fallthru
          _
        // Predicated region
        $region21: #{embedding_net_forward_pallas.1} parent=11 // pred_check
          %p168 = pneg %p100
        $region22: #{embedding_net_forward_pallas.1} parent=11 // pred_check_branch
          %170 = sbr.rel (%p168) target = $region24
        $region23: #{embedding_net_forward_pallas.1} parent=11 // pred_region
          _
        $region24: #{embedding_net_forward_pallas.1} parent=11 // pred_fallthru
          _
        // Predicated region
        $region25: #{embedding_net_forward_pallas.1} parent=11 // pred_check
          %p171 = pneg %p121
        $region26: #{embedding_net_forward_pallas.1} parent=11 // pred_check_branch
          %173 = sbr.rel (%p171) target = $region28
        $region27: #{embedding_net_forward_pallas.1} parent=11 // pred_region
          _
        $region28: #{embedding_net_forward_pallas.1} parent=11 // pred_fallthru
          _
      $region12: #{embedding_net_forward_pallas.1} parent=5 // pred_fallthru
        _
      %p174 = scmp.lt.s32.totalorder %s11, 2
      // Predicated region
      $region29: #{embedding_net_forward_pallas.1} parent=5 // pred_check
        %p175 = pneg %p174
      $region30: #{embedding_net_forward_pallas.1} parent=5 // pred_check_branch
        %177 = sbr.rel (%p175) target = $region32
      $region31: #{embedding_net_forward_pallas.1} parent=5 // pred_region
        // Predicated region
        $region33: #{embedding_net_forward_pallas.1} parent=31 // pred_check
          %p178 = pneg %p31
        $region34: #{embedding_net_forward_pallas.1} parent=31 // pred_check_branch
          %180 = sbr.rel (%p178) target = $region36
        $region35: #{embedding_net_forward_pallas.1} parent=31 // pred_region
          %s181 = smul.u32 4, %s11
          %s182 = ssub.s32 5, %s181
          %p183 = scmp.lt.s32.totalorder %s182, 4
          %s184 = scalar_select %p183, %s182, 4
          %s185 = smul.u32 8, %s184
          %s186 = smul.u32 %s185, 2
          %p187 = scmp.lt.s32.totalorder %s181, 4
          %s188 = scalar_select %p187, %s181, 4
          %s189 = smul.addr %s188, 2
          %s190 = smul.addr %s189, 8
          %s191 = scalar_lea.vmem %s0, %s190
          %s192 = smul.u32 4, %s11
          %s193 = ssub.s32 5, %s192
          %p194 = scmp.lt.s32.totalorder %s193, 4
          %s195 = scalar_select %p194, %s193, 4
          %s196 = smul.u32 8, %s195
          %s197 = smul.u32 %s196, 2
        $region36: #{embedding_net_forward_pallas.1} parent=31 // pred_fallthru
          _
      $region32: #{embedding_net_forward_pallas.1} parent=5 // pred_fallthru
        _
      %p198 = scmp.le.s32.totalorder 1, %s11
      %p199 = scmp.lt.s32.totalorder %s11, 3
      %p200 = pnand %p198, %p199
      %p201 = pneg %p200
      // Predicated region
      $region37: #{embedding_net_forward_pallas.1} parent=5 // pred_check
        _
      $region38: #{embedding_net_forward_pallas.1} parent=5 // pred_check_branch
        %203 = sbr.rel (%p200) target = $region40
      $region39: #{embedding_net_forward_pallas.1} parent=5 // pred_region
        %s204 = ssub.s32 %s11, 1
        %s205 = smul.u32 4, %s16
        %s206 = ssub.s32 5, %s205
        %p207 = scmp.lt.s32.totalorder %s206, 4
        %s208 = scalar_select %p207, %s206, 4
        %s209 = smul.u32 8, %s208
        %s210 = smul.u32 %s209, 2
        %p211 = scmp.lt.s32.totalorder %s205, 4
        %s212 = scalar_select %p211, %s205, 4
        %s213 = smul.addr %s212, 2
        %s214 = smul.addr %s213, 8
        %s215 = scalar_lea.vmem %s0, %s214
        %p216 = pneg %p37
        %p217 = pneg %p34
        %p218 = pneg %p58
        %p219 = pneg %p55
        %p220 = pneg %p79
        %p221 = pneg %p76
        %p222 = pneg %p100
        %p223 = pneg %p97
        %p224 = pneg %p121
        %p225 = pneg %p118
        %p226 = pneg %p147
        %p227 = pneg %p144
        %s228 = sand.u32 %s134, 1
        %s229 = sand.u32 %s134, 1
        %s230 = smul.addr %s229, 32
        %s231 = scalar_lea.vmem [#allocation2], %s230
        %s232 = smul.u32 4, %s16
        %s233 = ssub.s32 5, %s232
        %p234 = scmp.lt.s32.totalorder %s233, 4
        %s235 = scalar_select %p234, %s233, 4
        %s236 = smul.u32 8, %s235
        %s237 = smul.u32 %s236, 2
        %p238 = scmp.lt.s32.totalorder %s232, 4
        %s239 = scalar_select %p238, %s232, 4
        %s240 = smul.addr %s239, 2
        %s241 = smul.addr %s240, 8
        %s242 = scalar_lea.vmem %s0, %s241
        %s243 = smul.u32 4, %s16
        %s244 = ssub.s32 5, %s243
        %p245 = scmp.lt.s32.totalorder %s244, 4
        %s246 = scalar_select %p245, %s244, 4
        %s247 = smul.u32 8, %s246
        %s248 = smul.u32 %s247, 2
        %s249 = smul.u32 4, %s16
        %s250 = ssub.s32 5, %s249
        %p251 = scmp.lt.s32.totalorder %s250, 4
        %s252 = scalar_select %p251, %s250, 4
        %s253 = smul.u32 8, %s252
        %v254 = vld [vmem:[%s242] sm:$0xff]
        %v255 = vld [vmem:[%s242 + $0x8] sm:$0xff]
        %v256 = vld [vmem:[%s242 + $0x10] sm:$0xff]
        %v257 = vld [vmem:[%s242 + $0x18] sm:$0xff]
        %v258 = vld [vmem:[%s242 + $0x20] sm:$0xff]
        %v259 = vld [vmem:[%s242 + $0x28] sm:$0xff]
        %v260 = vld [vmem:[%s242 + $0x30] sm:$0xff]
        %v261 = vld [vmem:[%s242 + $0x38] sm:$0xff]
        %v262 = vpack.c.bf16 %v256, %v254
        %v263 = vpack.c.bf16 %v257, %v255
        %v264 = vpack.c.bf16 %v260, %v258
        %v265 = vpack.c.bf16 %v261, %v259
        %v266 = vld [vmem:[%s1] sm:$0xff]
        %v267 = vld [vmem:[%s1 + $0x8] sm:$0xff]
        %v268 = vld [vmem:[%s1 + $0x10] sm:$0xff]
        %v269 = vld [vmem:[%s1 + $0x18] sm:$0xff]
        %v270 = vld [vmem:[%s1 + $0x20] sm:$0xff]
        %v271 = vld [vmem:[%s1 + $0x28] sm:$0xff]
        %v272 = vld [vmem:[%s1 + $0x30] sm:$0xff]
        %v273 = vld [vmem:[%s1 + $0x38] sm:$0xff]
        %v274 = vld [vmem:[%s1 + $0x40] sm:$0xff]
        %v275 = vld [vmem:[%s1 + $0x48] sm:$0xff]
        %v276 = vld [vmem:[%s1 + $0x50] sm:$0xff]
        %v277 = vld [vmem:[%s1 + $0x58] sm:$0xff]
        %v278 = vld [vmem:[%s1 + $0x60] sm:$0xff]
        %v279 = vld [vmem:[%s1 + $0x68] sm:$0xff]
        %v280 = vld [vmem:[%s1 + $0x70] sm:$0xff]
        %v281 = vld [vmem:[%s1 + $0x78] sm:$0xff]
        %v282 = vld [vmem:[%s1 + $0x80] sm:$0xff]
        %v283 = vld [vmem:[%s1 + $0x88] sm:$0xff]
        %v284 = vld [vmem:[%s1 + $0x90] sm:$0xff]
        %v285 = vld [vmem:[%s1 + $0x98] sm:$0xff]
        %v286 = vld [vmem:[%s1 + $0xa0] sm:$0xff]
        %v287 = vld [vmem:[%s1 + $0xa8] sm:$0xff]
        %v288 = vld [vmem:[%s1 + $0xb0] sm:$0xff]
        %v289 = vld [vmem:[%s1 + $0xb8] sm:$0xff]
        %v290 = vld [vmem:[%s1 + $0xc0] sm:$0xff]
        %v291 = vld [vmem:[%s1 + $0xc8] sm:$0xff]
        %v292 = vld [vmem:[%s1 + $0xd0] sm:$0xff]
        %v293 = vld [vmem:[%s1 + $0xd8] sm:$0xff]
        %v294 = vld [vmem:[%s1 + $0xe0] sm:$0xff]
        %v295 = vld [vmem:[%s1 + $0xe8] sm:$0xff]
        %v296 = vld [vmem:[%s1 + $0xf0] sm:$0xff]
        %v297 = vld [vmem:[%s1 + $0xf8] sm:$0xff]
        %v298 = vld [vmem:[%s1 + $0x100] sm:$0xff]
        %v299 = vld [vmem:[%s1 + $0x108] sm:$0xff]
        %v300 = vld [vmem:[%s1 + $0x110] sm:$0xff]
        %v301 = vld [vmem:[%s1 + $0x118] sm:$0xff]
        %v302 = vld [vmem:[%s1 + $0x120] sm:$0xff]
        %v303 = vld [vmem:[%s1 + $0x128] sm:$0xff]
        %v304 = vld [vmem:[%s1 + $0x130] sm:$0xff]
        %v305 = vld [vmem:[%s1 + $0x138] sm:$0xff]
        %v306 = vld [vmem:[%s1 + $0x140] sm:$0xff]
        %v307 = vld [vmem:[%s1 + $0x148] sm:$0xff]
        %v308 = vld [vmem:[%s1 + $0x150] sm:$0xff]
        %v309 = vld [vmem:[%s1 + $0x158] sm:$0xff]
        %v310 = vld [vmem:[%s1 + $0x160] sm:$0xff]
        %v311 = vld [vmem:[%s1 + $0x168] sm:$0xff]
        %v312 = vld [vmem:[%s1 + $0x170] sm:$0xff]
        %v313 = vld [vmem:[%s1 + $0x178] sm:$0xff]
        %v314 = vld [vmem:[%s1 + $0x180] sm:$0xff]
        %v315 = vld [vmem:[%s1 + $0x188] sm:$0xff]
        %v316 = vld [vmem:[%s1 + $0x190] sm:$0xff]
        %v317 = vld [vmem:[%s1 + $0x198] sm:$0xff]
        %v318 = vld [vmem:[%s1 + $0x1a0] sm:$0xff]
        %v319 = vld [vmem:[%s1 + $0x1a8] sm:$0xff]
        %v320 = vld [vmem:[%s1 + $0x1b0] sm:$0xff]
        %v321 = vld [vmem:[%s1 + $0x1b8] sm:$0xff]
        %v322 = vld [vmem:[%s1 + $0x1c0] sm:$0xff]
        %v323 = vld [vmem:[%s1 + $0x1c8] sm:$0xff]
        %v324 = vld [vmem:[%s1 + $0x1d0] sm:$0xff]
        %v325 = vld [vmem:[%s1 + $0x1d8] sm:$0xff]
        %v326 = vld [vmem:[%s1 + $0x1e0] sm:$0xff]
        %v327 = vld [vmem:[%s1 + $0x1e8] sm:$0xff]
        %v328 = vld [vmem:[%s1 + $0x1f0] sm:$0xff]
        %v329 = vld [vmem:[%s1 + $0x1f8] sm:$0xff]
        %v330 = vld [vmem:[%s2] sm:$0xf]
        %v332 = vperm.slane %v330, 0
        %v333 = vperm.slane %v330, 1
        %v334 = vperm.slane %v330, 2
        %v335 = vperm.slane %v330, 3
        %v404 = vunpack.c.l.b16 %v266
        %v405 = vunpack.c.h.b16 %v266
        %v406 = vunpack.c.l.b16 %v267
        %v407 = vunpack.c.h.b16 %v267
        %v408 = vunpack.c.l.b16 %v268
        %v409 = vunpack.c.h.b16 %v268
        %v410 = vunpack.c.l.b16 %v269
        %v411 = vunpack.c.h.b16 %v269
        %v412 = vunpack.c.l.b16 %v270
        %v413 = vunpack.c.h.b16 %v270
        %v414 = vunpack.c.l.b16 %v271
        %v415 = vunpack.c.h.b16 %v271
        %v416 = vunpack.c.l.b16 %v272
        %v417 = vunpack.c.h.b16 %v272
        %v418 = vunpack.c.l.b16 %v273
        %v419 = vunpack.c.h.b16 %v273
        %v420 = vunpack.c.l.b16 %v274
        %v421 = vunpack.c.h.b16 %v274
        %v422 = vunpack.c.l.b16 %v275
        %v423 = vunpack.c.h.b16 %v275
        %v424 = vunpack.c.l.b16 %v276
        %v425 = vunpack.c.h.b16 %v276
        %v426 = vunpack.c.l.b16 %v277
        %v427 = vunpack.c.h.b16 %v277
        %v428 = vunpack.c.l.b16 %v278
        %v429 = vunpack.c.h.b16 %v278
        %v430 = vunpack.c.l.b16 %v279
        %v431 = vunpack.c.h.b16 %v279
        %v432 = vunpack.c.l.b16 %v280
        %v433 = vunpack.c.h.b16 %v280
        %v434 = vunpack.c.l.b16 %v281
        %v435 = vunpack.c.h.b16 %v281
        %v436 = vunpack.c.l.b16 %v282
        %v437 = vunpack.c.h.b16 %v282
        %v438 = vunpack.c.l.b16 %v283
        %v439 = vunpack.c.h.b16 %v283
        %v440 = vunpack.c.l.b16 %v284
        %v441 = vunpack.c.h.b16 %v284
        %v442 = vunpack.c.l.b16 %v285
        %v443 = vunpack.c.h.b16 %v285
        %v444 = vunpack.c.l.b16 %v286
        %v445 = vunpack.c.h.b16 %v286
        %v446 = vunpack.c.l.b16 %v287
        %v447 = vunpack.c.h.b16 %v287
        %v448 = vunpack.c.l.b16 %v288
        %v449 = vunpack.c.h.b16 %v288
        %v450 = vunpack.c.l.b16 %v289
        %v451 = vunpack.c.h.b16 %v289
        %v452 = vunpack.c.l.b16 %v290
        %v453 = vunpack.c.h.b16 %v290
        %v454 = vunpack.c.l.b16 %v291
        %v455 = vunpack.c.h.b16 %v291
        %v456 = vunpack.c.l.b16 %v292
        %v457 = vunpack.c.h.b16 %v292
        %v458 = vunpack.c.l.b16 %v293
        %v459 = vunpack.c.h.b16 %v293
        %v460 = vunpack.c.l.b16 %v294
        %v461 = vunpack.c.h.b16 %v294
        %v462 = vunpack.c.l.b16 %v295
        %v463 = vunpack.c.h.b16 %v295
        %v464 = vunpack.c.l.b16 %v296
        %v465 = vunpack.c.h.b16 %v296
        %v466 = vunpack.c.l.b16 %v297
        %v467 = vunpack.c.h.b16 %v297
        %v468 = vunpack.c.l.b16 %v298
        %v469 = vunpack.c.h.b16 %v298
        %v470 = vunpack.c.l.b16 %v299
        %v471 = vunpack.c.h.b16 %v299
        %v472 = vunpack.c.l.b16 %v300
        %v473 = vunpack.c.h.b16 %v300
        %v474 = vunpack.c.l.b16 %v301
        %v475 = vunpack.c.h.b16 %v301
        %v476 = vunpack.c.l.b16 %v302
        %v477 = vunpack.c.h.b16 %v302
        %v478 = vunpack.c.l.b16 %v303
        %v479 = vunpack.c.h.b16 %v303
        %v480 = vunpack.c.l.b16 %v304
        %v481 = vunpack.c.h.b16 %v304
        %v482 = vunpack.c.l.b16 %v305
        %v483 = vunpack.c.h.b16 %v305
        %v484 = vunpack.c.l.b16 %v306
        %v485 = vunpack.c.h.b16 %v306
        %v486 = vunpack.c.l.b16 %v307
        %v487 = vunpack.c.h.b16 %v307
        %v488 = vunpack.c.l.b16 %v308
        %v489 = vunpack.c.h.b16 %v308
        %v490 = vunpack.c.l.b16 %v309
        %v491 = vunpack.c.h.b16 %v309
        %v492 = vunpack.c.l.b16 %v310
        %v493 = vunpack.c.h.b16 %v310
        %v494 = vunpack.c.l.b16 %v311
        %v495 = vunpack.c.h.b16 %v311
        %v496 = vunpack.c.l.b16 %v312
        %v497 = vunpack.c.h.b16 %v312
        %v498 = vunpack.c.l.b16 %v313
        %v499 = vunpack.c.h.b16 %v313
        %v500 = vunpack.c.l.b16 %v314
        %v501 = vunpack.c.h.b16 %v314
        %v502 = vunpack.c.l.b16 %v315
        %v503 = vunpack.c.h.b16 %v315
        %v504 = vunpack.c.l.b16 %v316
        %v505 = vunpack.c.h.b16 %v316
        %v506 = vunpack.c.l.b16 %v317
        %v507 = vunpack.c.h.b16 %v317
        %v508 = vunpack.c.l.b16 %v318
        %v509 = vunpack.c.h.b16 %v318
        %v510 = vunpack.c.l.b16 %v319
        %v511 = vunpack.c.h.b16 %v319
        %v512 = vunpack.c.l.b16 %v320
        %v513 = vunpack.c.h.b16 %v320
        %v514 = vunpack.c.l.b16 %v321
        %v515 = vunpack.c.h.b16 %v321
        %v516 = vunpack.c.l.b16 %v322
        %v517 = vunpack.c.h.b16 %v322
        %v518 = vunpack.c.l.b16 %v323
        %v519 = vunpack.c.h.b16 %v323
        %v520 = vunpack.c.l.b16 %v324
        %v521 = vunpack.c.h.b16 %v324
        %v522 = vunpack.c.l.b16 %v325
        %v523 = vunpack.c.h.b16 %v325
        %v524 = vunpack.c.l.b16 %v326
        %v525 = vunpack.c.h.b16 %v326
        %v526 = vunpack.c.l.b16 %v327
        %v527 = vunpack.c.h.b16 %v327
        %v528 = vunpack.c.l.b16 %v328
        %v529 = vunpack.c.h.b16 %v328
        %v530 = vunpack.c.l.b16 %v329
        %v531 = vunpack.c.h.b16 %v329
        %v532 = vpack.c.b16 %v408, %v404
        %v533 = vpack.c.b16 %v409, %v405
        %v534 = vpack.c.b16 %v410, %v406
        %v535 = vpack.c.b16 %v411, %v407
        %v536 = vpack.c.b16 %v416, %v412
        %v537 = vpack.c.b16 %v417, %v413
        %v538 = vpack.c.b16 %v418, %v414
        %v539 = vpack.c.b16 %v419, %v415
        %v540 = vpack.c.b16 %v424, %v420
        %v541 = vpack.c.b16 %v425, %v421
        %v542 = vpack.c.b16 %v426, %v422
        %v543 = vpack.c.b16 %v427, %v423
        %v544 = vpack.c.b16 %v432, %v428
        %v545 = vpack.c.b16 %v433, %v429
        %v546 = vpack.c.b16 %v434, %v430
        %v547 = vpack.c.b16 %v435, %v431
        %v548 = vpack.c.b16 %v440, %v436
        %v549 = vpack.c.b16 %v441, %v437
        %v550 = vpack.c.b16 %v442, %v438
        %v551 = vpack.c.b16 %v443, %v439
        %v552 = vpack.c.b16 %v448, %v444
        %v553 = vpack.c.b16 %v449, %v445
        %v554 = vpack.c.b16 %v450, %v446
        %v555 = vpack.c.b16 %v451, %v447
        %v556 = vpack.c.b16 %v456, %v452
        %v557 = vpack.c.b16 %v457, %v453
        %v558 = vpack.c.b16 %v458, %v454
        %v559 = vpack.c.b16 %v459, %v455
        %v560 = vpack.c.b16 %v464, %v460
        %v561 = vpack.c.b16 %v465, %v461
        %v562 = vpack.c.b16 %v466, %v462
        %v563 = vpack.c.b16 %v467, %v463
        %v564 = vpack.c.b16 %v472, %v468
        %v565 = vpack.c.b16 %v473, %v469
        %v566 = vpack.c.b16 %v474, %v470
        %v567 = vpack.c.b16 %v475, %v471
        %v568 = vpack.c.b16 %v480, %v476
        %v569 = vpack.c.b16 %v481, %v477
        %v570 = vpack.c.b16 %v482, %v478
        %v571 = vpack.c.b16 %v483, %v479
        %v572 = vpack.c.b16 %v488, %v484
        %v573 = vpack.c.b16 %v489, %v485
        %v574 = vpack.c.b16 %v490, %v486
        %v575 = vpack.c.b16 %v491, %v487
        %v576 = vpack.c.b16 %v496, %v492
        %v577 = vpack.c.b16 %v497, %v493
        %v578 = vpack.c.b16 %v498, %v494
        %v579 = vpack.c.b16 %v499, %v495
        %v580 = vpack.c.b16 %v504, %v500
        %v581 = vpack.c.b16 %v505, %v501
        %v582 = vpack.c.b16 %v506, %v502
        %v583 = vpack.c.b16 %v507, %v503
        %v584 = vpack.c.b16 %v512, %v508
        %v585 = vpack.c.b16 %v513, %v509
        %v586 = vpack.c.b16 %v514, %v510
        %v587 = vpack.c.b16 %v515, %v511
        %v588 = vpack.c.b16 %v520, %v516
        %v589 = vpack.c.b16 %v521, %v517
        %v590 = vpack.c.b16 %v522, %v518
        %v591 = vpack.c.b16 %v523, %v519
        %v592 = vpack.c.b16 %v528, %v524
        %v593 = vpack.c.b16 %v529, %v525
        %v594 = vpack.c.b16 %v530, %v526
        %v595 = vpack.c.b16 %v531, %v527
        %660 = vmatpush.bf16.msra.mxu0 %v560
        %661 = vmatpush.bf16.msra.mxu0 %v556
        %662 = vmatpush.bf16.msra.mxu0 %v552
        %663 = vmatpush.bf16.msra.mxu0 %v548
        %664 = vmatpush.bf16.msra.mxu0 %v544
        %665 = vmatpush.bf16.msra.mxu0 %v540
        %666 = vmatpush.bf16.msra.mxu0 %v536
        %667 = vmatpush.bf16.msra.mxu0 %v532
        %668 = vmatmul.bf16.gmra.mxu0 %v262
        %v669 = vpop.f32.mrf.mxu0
        %v670 = vadd.f32 %v332, %v669
        %v671 = vpop.f32.mrf.mxu0
        %v672 = vadd.f32 %v332, %v671
        %673 = vmatmul.bf16.gmra.mxu0 %v264
        %v674 = vpop.f32.mrf.mxu0
        %v675 = vadd.f32 %v332, %v674
        %v676 = vpop.f32.mrf.mxu0
        %v677 = vadd.f32 %v332, %v676
        %678 = vdwg.mxu0
        %679 = vmatpush.bf16.msra.mxu0 %v592
        %680 = vmatpush.bf16.msra.mxu0 %v588
        %681 = vmatpush.bf16.msra.mxu0 %v584
        %682 = vmatpush.bf16.msra.mxu0 %v580
        %683 = vmatpush.bf16.msra.mxu0 %v576
        %684 = vmatpush.bf16.msra.mxu0 %v572
        %685 = vmatpush.bf16.msra.mxu0 %v568
        %686 = vmatpush.bf16.msra.mxu0 %v564
        %687 = vmatmul.bf16.gmra.mxu0 %v263
        %v688 = vpop.f32.mrf.mxu0
        %v689 = vadd.f32 %v670, %v688
        %v690 = vpop.f32.mrf.mxu0
        %v691 = vadd.f32 %v672, %v690
        %692 = vmatmul.bf16.gmra.mxu0 %v265
        %v693 = vpop.f32.mrf.mxu0
        %v694 = vadd.f32 %v675, %v693
        %v695 = vpop.f32.mrf.mxu0
        %v696 = vadd.f32 %v677, %v695
        %697 = vdwg.mxu0
        %698 = vmatpush.bf16.msra.mxu0 %v561
        %699 = vmatpush.bf16.msra.mxu0 %v557
        %700 = vmatpush.bf16.msra.mxu0 %v553
        %701 = vmatpush.bf16.msra.mxu0 %v549
        %702 = vmatpush.bf16.msra.mxu0 %v545
        %703 = vmatpush.bf16.msra.mxu0 %v541
        %704 = vmatpush.bf16.msra.mxu0 %v537
        %705 = vmatpush.bf16.msra.mxu0 %v533
        %706 = vmatmul.bf16.gmra.mxu0 %v262
        %v707 = vpop.f32.mrf.mxu0
        %v708 = vadd.f32 %v333, %v707
        %v709 = vpop.f32.mrf.mxu0
        %v710 = vadd.f32 %v333, %v709
        %711 = vmatmul.bf16.gmra.mxu0 %v264
        %v712 = vpop.f32.mrf.mxu0
        %v713 = vadd.f32 %v333, %v712
        %v714 = vpop.f32.mrf.mxu0
        %v715 = vadd.f32 %v333, %v714
        %716 = vdwg.mxu0
        %717 = vmatpush.bf16.msra.mxu0 %v593
        %718 = vmatpush.bf16.msra.mxu0 %v589
        %719 = vmatpush.bf16.msra.mxu0 %v585
        %720 = vmatpush.bf16.msra.mxu0 %v581
        %721 = vmatpush.bf16.msra.mxu0 %v577
        %722 = vmatpush.bf16.msra.mxu0 %v573
        %723 = vmatpush.bf16.msra.mxu0 %v569
        %724 = vmatpush.bf16.msra.mxu0 %v565
        %725 = vmatmul.bf16.gmra.mxu0 %v263
        %v726 = vpop.f32.mrf.mxu0
        %v727 = vadd.f32 %v708, %v726
        %v728 = vpop.f32.mrf.mxu0
        %v729 = vadd.f32 %v710, %v728
        %730 = vmatmul.bf16.gmra.mxu0 %v265
        %v731 = vpop.f32.mrf.mxu0
        %v732 = vadd.f32 %v713, %v731
        %v733 = vpop.f32.mrf.mxu0
        %v734 = vadd.f32 %v715, %v733
        %735 = vdwg.mxu0
        %736 = vmatpush.bf16.msra.mxu0 %v562
        %737 = vmatpush.bf16.msra.mxu0 %v558
        %738 = vmatpush.bf16.msra.mxu0 %v554
        %739 = vmatpush.bf16.msra.mxu0 %v550
        %740 = vmatpush.bf16.msra.mxu0 %v546
        %741 = vmatpush.bf16.msra.mxu0 %v542
        %742 = vmatpush.bf16.msra.mxu0 %v538
        %743 = vmatpush.bf16.msra.mxu0 %v534
        %744 = vmatmul.bf16.gmra.mxu0 %v262
        %v745 = vpop.f32.mrf.mxu0
        %v746 = vadd.f32 %v334, %v745
        %v747 = vpop.f32.mrf.mxu0
        %v748 = vadd.f32 %v334, %v747
        %749 = vmatmul.bf16.gmra.mxu0 %v264
        %v750 = vpop.f32.mrf.mxu0
        %v751 = vadd.f32 %v334, %v750
        %v752 = vpop.f32.mrf.mxu0
        %v753 = vadd.f32 %v334, %v752
        %754 = vdwg.mxu0
        %755 = vmatpush.bf16.msra.mxu0 %v594
        %756 = vmatpush.bf16.msra.mxu0 %v590
        %757 = vmatpush.bf16.msra.mxu0 %v586
        %758 = vmatpush.bf16.msra.mxu0 %v582
        %759 = vmatpush.bf16.msra.mxu0 %v578
        %760 = vmatpush.bf16.msra.mxu0 %v574
        %761 = vmatpush.bf16.msra.mxu0 %v570
        %762 = vmatpush.bf16.msra.mxu0 %v566
        %763 = vmatmul.bf16.gmra.mxu0 %v263
        %v764 = vpop.f32.mrf.mxu0
        %v765 = vadd.f32 %v746, %v764
        %v766 = vpop.f32.mrf.mxu0
        %v767 = vadd.f32 %v748, %v766
        %768 = vmatmul.bf16.gmra.mxu0 %v265
        %v769 = vpop.f32.mrf.mxu0
        %v770 = vadd.f32 %v751, %v769
        %v771 = vpop.f32.mrf.mxu0
        %v772 = vadd.f32 %v753, %v771
        %773 = vdwg.mxu0
        %774 = vmatpush.bf16.msra.mxu0 %v563
        %775 = vmatpush.bf16.msra.mxu0 %v559
        %776 = vmatpush.bf16.msra.mxu0 %v555
        %777 = vmatpush.bf16.msra.mxu0 %v551
        %778 = vmatpush.bf16.msra.mxu0 %v547
        %779 = vmatpush.bf16.msra.mxu0 %v543
        %780 = vmatpush.bf16.msra.mxu0 %v539
        %781 = vmatpush.bf16.msra.mxu0 %v535
        %782 = vmatmul.bf16.gmra.mxu0 %v262
        %v783 = vpop.f32.mrf.mxu0
        %v784 = vadd.f32 %v335, %v783
        %v785 = vpop.f32.mrf.mxu0
        %v786 = vadd.f32 %v335, %v785
        %787 = vmatmul.bf16.gmra.mxu0 %v264
        %v788 = vpop.f32.mrf.mxu0
        %v789 = vadd.f32 %v335, %v788
        %v790 = vpop.f32.mrf.mxu0
        %v791 = vadd.f32 %v335, %v790
        %792 = vdwg.mxu0
        %793 = vmatpush.bf16.msra.mxu0 %v595
        %794 = vmatpush.bf16.msra.mxu0 %v591
        %795 = vmatpush.bf16.msra.mxu0 %v587
        %796 = vmatpush.bf16.msra.mxu0 %v583
        %797 = vmatpush.bf16.msra.mxu0 %v579
        %798 = vmatpush.bf16.msra.mxu0 %v575
        %799 = vmatpush.bf16.msra.mxu0 %v571
        %800 = vmatpush.bf16.msra.mxu0 %v567
        %801 = vmatmul.bf16.gmra.mxu0 %v263
        %v802 = vpop.f32.mrf.mxu0
        %v803 = vadd.f32 %v784, %v802
        %v804 = vpop.f32.mrf.mxu0
        %v805 = vadd.f32 %v786, %v804
        %806 = vmatmul.bf16.gmra.mxu0 %v265
        %v807 = vpop.f32.mrf.mxu0
        %v808 = vadd.f32 %v789, %v807
        %v809 = vpop.f32.mrf.mxu0
        %v810 = vadd.f32 %v791, %v809
        %811 = vdwg.mxu0
        %v812 = vmax.f32 %v689, 0.0
        %v813 = vmax.f32 %v727, 0.0
        %v814 = vmax.f32 %v765, 0.0
        %v815 = vmax.f32 %v803, 0.0
        %v816 = vmax.f32 %v691, 0.0
        %v817 = vmax.f32 %v729, 0.0
        %v818 = vmax.f32 %v767, 0.0
        %v819 = vmax.f32 %v805, 0.0
        %v820 = vmax.f32 %v694, 0.0
        %v821 = vmax.f32 %v732, 0.0
        %v822 = vmax.f32 %v770, 0.0
        %v823 = vmax.f32 %v808, 0.0
        %v824 = vmax.f32 %v696, 0.0
        %v825 = vmax.f32 %v734, 0.0
        %v826 = vmax.f32 %v772, 0.0
        %v827 = vmax.f32 %v810, 0.0
        %v828 = vpack.c.bf16 %v816, %v812
        %v829 = vpack.c.bf16 %v817, %v813
        %v830 = vpack.c.bf16 %v818, %v814
        %v831 = vpack.c.bf16 %v819, %v815
        %v832 = vpack.c.bf16 %v824, %v820
        %v833 = vpack.c.bf16 %v825, %v821
        %v834 = vpack.c.bf16 %v826, %v822
        %v835 = vpack.c.bf16 %v827, %v823
        %v836 = vld [vmem:[%s3] sm:$0xf]
        %v837 = vld [vmem:[%s3 + $0x4] sm:$0xf]
        %v838 = vld [vmem:[%s3 + $0x8] sm:$0xf]
        %v839 = vld [vmem:[%s3 + $0xc] sm:$0xf]
        %v840 = vld [vmem:[%s3 + $0x10] sm:$0xf]
        %v841 = vld [vmem:[%s3 + $0x14] sm:$0xf]
        %v842 = vld [vmem:[%s3 + $0x18] sm:$0xf]
        %v843 = vld [vmem:[%s3 + $0x1c] sm:$0xf]
        %v844 = vld [vmem:[%s3 + $0x20] sm:$0xf]
        %v845 = vld [vmem:[%s3 + $0x24] sm:$0xf]
        %v846 = vld [vmem:[%s3 + $0x28] sm:$0xf]
        %v847 = vld [vmem:[%s3 + $0x2c] sm:$0xf]
        %v848 = vld [vmem:[%s3 + $0x30] sm:$0xf]
        %v849 = vld [vmem:[%s3 + $0x34] sm:$0xf]
        %v850 = vld [vmem:[%s3 + $0x38] sm:$0xf]
        %v851 = vld [vmem:[%s3 + $0x3c] sm:$0xf]
        %v852 = vld [vmem:[%s3 + $0x40] sm:$0xf]
        %v853 = vld [vmem:[%s3 + $0x44] sm:$0xf]
        %v854 = vld [vmem:[%s3 + $0x48] sm:$0xf]
        %v855 = vld [vmem:[%s3 + $0x4c] sm:$0xf]
        %v856 = vld [vmem:[%s3 + $0x50] sm:$0xf]
        %v857 = vld [vmem:[%s3 + $0x54] sm:$0xf]
        %v858 = vld [vmem:[%s3 + $0x58] sm:$0xf]
        %v859 = vld [vmem:[%s3 + $0x5c] sm:$0xf]
        %v860 = vld [vmem:[%s3 + $0x60] sm:$0xf]
        %v861 = vld [vmem:[%s3 + $0x64] sm:$0xf]
        %v862 = vld [vmem:[%s3 + $0x68] sm:$0xf]
        %v863 = vld [vmem:[%s3 + $0x6c] sm:$0xf]
        %v864 = vld [vmem:[%s3 + $0x70] sm:$0xf]
        %v865 = vld [vmem:[%s3 + $0x74] sm:$0xf]
        %v866 = vld [vmem:[%s3 + $0x78] sm:$0xf]
        %v867 = vld [vmem:[%s3 + $0x7c] sm:$0xf]
        %v868 = vld [vmem:[%s3 + $0x80] sm:$0xf]
        %v869 = vld [vmem:[%s3 + $0x84] sm:$0xf]
        %v870 = vld [vmem:[%s3 + $0x88] sm:$0xf]
        %v871 = vld [vmem:[%s3 + $0x8c] sm:$0xf]
        %v872 = vld [vmem:[%s3 + $0x90] sm:$0xf]
        %v873 = vld [vmem:[%s3 + $0x94] sm:$0xf]
        %v874 = vld [vmem:[%s3 + $0x98] sm:$0xf]
        %v875 = vld [vmem:[%s3 + $0x9c] sm:$0xf]
        %v876 = vld [vmem:[%s3 + $0xa0] sm:$0xf]
        %v877 = vld [vmem:[%s3 + $0xa4] sm:$0xf]
        %v878 = vld [vmem:[%s3 + $0xa8] sm:$0xf]
        %v879 = vld [vmem:[%s3 + $0xac] sm:$0xf]
        %v880 = vld [vmem:[%s3 + $0xb0] sm:$0xf]
        %v881 = vld [vmem:[%s3 + $0xb4] sm:$0xf]
        %v882 = vld [vmem:[%s3 + $0xb8] sm:$0xf]
        %v883 = vld [vmem:[%s3 + $0xbc] sm:$0xf]
        %v884 = vld [vmem:[%s3 + $0xc0] sm:$0xf]
        %v885 = vld [vmem:[%s3 + $0xc4] sm:$0xf]
        %v886 = vld [vmem:[%s3 + $0xc8] sm:$0xf]
        %v887 = vld [vmem:[%s3 + $0xcc] sm:$0xf]
        %v888 = vld [vmem:[%s3 + $0xd0] sm:$0xf]
        %v889 = vld [vmem:[%s3 + $0xd4] sm:$0xf]
        %v890 = vld [vmem:[%s3 + $0xd8] sm:$0xf]
        %v891 = vld [vmem:[%s3 + $0xdc] sm:$0xf]
        %v892 = vld [vmem:[%s3 + $0xe0] sm:$0xf]
        %v893 = vld [vmem:[%s3 + $0xe4] sm:$0xf]
        %v894 = vld [vmem:[%s3 + $0xe8] sm:$0xf]
        %v895 = vld [vmem:[%s3 + $0xec] sm:$0xf]
        %v896 = vld [vmem:[%s3 + $0xf0] sm:$0xf]
        %v897 = vld [vmem:[%s3 + $0xf4] sm:$0xf]
        %v898 = vld [vmem:[%s3 + $0xf8] sm:$0xf]
        %v899 = vld [vmem:[%s3 + $0xfc] sm:$0xf]
        %v900 = vld [vmem:[%s4] sm:$0x1]
        %v902 = vperm.slane %v900, 0
        %v968 = vunpack.c.l.b16 %v836
        %v969 = vunpack.c.l.b16 %v837
        %v970 = vunpack.c.l.b16 %v838
        %v971 = vunpack.c.l.b16 %v839
        %v972 = vunpack.c.l.b16 %v840
        %v973 = vunpack.c.l.b16 %v841
        %v974 = vunpack.c.l.b16 %v842
        %v975 = vunpack.c.l.b16 %v843
        %v976 = vunpack.c.l.b16 %v844
        %v977 = vunpack.c.l.b16 %v845
        %v978 = vunpack.c.l.b16 %v846
        %v979 = vunpack.c.l.b16 %v847
        %v980 = vunpack.c.l.b16 %v848
        %v981 = vunpack.c.l.b16 %v849
        %v982 = vunpack.c.l.b16 %v850
        %v983 = vunpack.c.l.b16 %v851
        %v984 = vunpack.c.l.b16 %v852
        %v985 = vunpack.c.l.b16 %v853
        %v986 = vunpack.c.l.b16 %v854
        %v987 = vunpack.c.l.b16 %v855
        %v988 = vunpack.c.l.b16 %v856
        %v989 = vunpack.c.l.b16 %v857
        %v990 = vunpack.c.l.b16 %v858
        %v991 = vunpack.c.l.b16 %v859
        %v992 = vunpack.c.l.b16 %v860
        %v993 = vunpack.c.l.b16 %v861
        %v994 = vunpack.c.l.b16 %v862
        %v995 = vunpack.c.l.b16 %v863
        %v996 = vunpack.c.l.b16 %v864
        %v997 = vunpack.c.l.b16 %v865
        %v998 = vunpack.c.l.b16 %v866
        %v999 = vunpack.c.l.b16 %v867
        %v1000 = vunpack.c.l.b16 %v868
        %v1001 = vunpack.c.l.b16 %v869
        %v1002 = vunpack.c.l.b16 %v870
        %v1003 = vunpack.c.l.b16 %v871
        %v1004 = vunpack.c.l.b16 %v872
        %v1005 = vunpack.c.l.b16 %v873
        %v1006 = vunpack.c.l.b16 %v874
        %v1007 = vunpack.c.l.b16 %v875
        %v1008 = vunpack.c.l.b16 %v876
        %v1009 = vunpack.c.l.b16 %v877
        %v1010 = vunpack.c.l.b16 %v878
        %v1011 = vunpack.c.l.b16 %v879
        %v1012 = vunpack.c.l.b16 %v880
        %v1013 = vunpack.c.l.b16 %v881
        %v1014 = vunpack.c.l.b16 %v882
        %v1015 = vunpack.c.l.b16 %v883
        %v1016 = vunpack.c.l.b16 %v884
        %v1017 = vunpack.c.l.b16 %v885
        %v1018 = vunpack.c.l.b16 %v886
        %v1019 = vunpack.c.l.b16 %v887
        %v1020 = vunpack.c.l.b16 %v888
        %v1021 = vunpack.c.l.b16 %v889
        %v1022 = vunpack.c.l.b16 %v890
        %v1023 = vunpack.c.l.b16 %v891
        %v1024 = vunpack.c.l.b16 %v892
        %v1025 = vunpack.c.l.b16 %v893
        %v1026 = vunpack.c.l.b16 %v894
        %v1027 = vunpack.c.l.b16 %v895
        %v1028 = vunpack.c.l.b16 %v896
        %v1029 = vunpack.c.l.b16 %v897
        %v1030 = vunpack.c.l.b16 %v898
        %v1031 = vunpack.c.l.b16 %v899
        %v1032 = vpack.c.b16 %v969, %v968
        %v1033 = vpack.c.b16 %v971, %v970
        %v1034 = vpack.c.b16 %v973, %v972
        %v1035 = vpack.c.b16 %v975, %v974
        %v1036 = vpack.c.b16 %v977, %v976
        %v1037 = vpack.c.b16 %v979, %v978
        %v1038 = vpack.c.b16 %v981, %v980
        %v1039 = vpack.c.b16 %v983, %v982
        %v1040 = vpack.c.b16 %v985, %v984
        %v1041 = vpack.c.b16 %v987, %v986
        %v1042 = vpack.c.b16 %v989, %v988
        %v1043 = vpack.c.b16 %v991, %v990
        %v1044 = vpack.c.b16 %v993, %v992
        %v1045 = vpack.c.b16 %v995, %v994
        %v1046 = vpack.c.b16 %v997, %v996
        %v1047 = vpack.c.b16 %v999, %v998
        %v1048 = vpack.c.b16 %v1001, %v1000
        %v1049 = vpack.c.b16 %v1003, %v1002
        %v1050 = vpack.c.b16 %v1005, %v1004
        %v1051 = vpack.c.b16 %v1007, %v1006
        %v1052 = vpack.c.b16 %v1009, %v1008
        %v1053 = vpack.c.b16 %v1011, %v1010
        %v1054 = vpack.c.b16 %v1013, %v1012
        %v1055 = vpack.c.b16 %v1015, %v1014
        %v1056 = vpack.c.b16 %v1017, %v1016
        %v1057 = vpack.c.b16 %v1019, %v1018
        %v1058 = vpack.c.b16 %v1021, %v1020
        %v1059 = vpack.c.b16 %v1023, %v1022
        %v1060 = vpack.c.b16 %v1025, %v1024
        %v1061 = vpack.c.b16 %v1027, %v1026
        %v1062 = vpack.c.b16 %v1029, %v1028
        %v1063 = vpack.c.b16 %v1031, %v1030
        %1096 = vmatpush.bf16.msra.mxu0 %v1039
        %1097 = vmatpush.bf16.msra.mxu0 %v1038
        %1098 = vmatpush.bf16.msra.mxu0 %v1037
        %1099 = vmatpush.bf16.msra.mxu0 %v1036
        %1100 = vmatpush.bf16.msra.mxu0 %v1035
        %1101 = vmatpush.bf16.msra.mxu0 %v1034
        %1102 = vmatpush.bf16.msra.mxu0 %v1033
        %1103 = vmatpush.bf16.msra.mxu0 %v1032
        %1104 = vmatmul.bf16.gmra.mxu0 %v828
        %v1105 = vpop.f32.mrf.mxu0
        %v1106 = vadd.f32 %v902, %v1105
        %v1107 = vpop.f32.mrf.mxu0
        %v1108 = vadd.f32 %v902, %v1107
        %1109 = vmatmul.bf16.gmra.mxu0 %v832
        %v1110 = vpop.f32.mrf.mxu0
        %v1111 = vadd.f32 %v902, %v1110
        %v1112 = vpop.f32.mrf.mxu0
        %v1113 = vadd.f32 %v902, %v1112
        %1114 = vdwg.mxu0
        %1115 = vmatpush.bf16.msra.mxu0 %v1047
        %1116 = vmatpush.bf16.msra.mxu0 %v1046
        %1117 = vmatpush.bf16.msra.mxu0 %v1045
        %1118 = vmatpush.bf16.msra.mxu0 %v1044
        %1119 = vmatpush.bf16.msra.mxu0 %v1043
        %1120 = vmatpush.bf16.msra.mxu0 %v1042
        %1121 = vmatpush.bf16.msra.mxu0 %v1041
        %1122 = vmatpush.bf16.msra.mxu0 %v1040
        %1123 = vmatmul.bf16.gmra.mxu0 %v829
        %v1124 = vpop.f32.mrf.mxu0
        %v1125 = vadd.f32 %v1106, %v1124
        %v1126 = vpop.f32.mrf.mxu0
        %v1127 = vadd.f32 %v1108, %v1126
        %1128 = vmatmul.bf16.gmra.mxu0 %v833
        %v1129 = vpop.f32.mrf.mxu0
        %v1130 = vadd.f32 %v1111, %v1129
        %v1131 = vpop.f32.mrf.mxu0
        %v1132 = vadd.f32 %v1113, %v1131
        %1133 = vdwg.mxu0
        %1134 = vmatpush.bf16.msra.mxu0 %v1055
        %1135 = vmatpush.bf16.msra.mxu0 %v1054
        %1136 = vmatpush.bf16.msra.mxu0 %v1053
        %1137 = vmatpush.bf16.msra.mxu0 %v1052
        %1138 = vmatpush.bf16.msra.mxu0 %v1051
        %1139 = vmatpush.bf16.msra.mxu0 %v1050
        %1140 = vmatpush.bf16.msra.mxu0 %v1049
        %1141 = vmatpush.bf16.msra.mxu0 %v1048
        %1142 = vmatmul.bf16.gmra.mxu0 %v830
        %v1143 = vpop.f32.mrf.mxu0
        %v1144 = vadd.f32 %v1125, %v1143
        %v1145 = vpop.f32.mrf.mxu0
        %v1146 = vadd.f32 %v1127, %v1145
        %1147 = vmatmul.bf16.gmra.mxu0 %v834
        %v1148 = vpop.f32.mrf.mxu0
        %v1149 = vadd.f32 %v1130, %v1148
        %v1150 = vpop.f32.mrf.mxu0
        %v1151 = vadd.f32 %v1132, %v1150
        %1152 = vdwg.mxu0
        %1153 = vmatpush.bf16.msra.mxu0 %v1063
        %1154 = vmatpush.bf16.msra.mxu0 %v1062
        %1155 = vmatpush.bf16.msra.mxu0 %v1061
        %1156 = vmatpush.bf16.msra.mxu0 %v1060
        %1157 = vmatpush.bf16.msra.mxu0 %v1059
        %1158 = vmatpush.bf16.msra.mxu0 %v1058
        %1159 = vmatpush.bf16.msra.mxu0 %v1057
        %1160 = vmatpush.bf16.msra.mxu0 %v1056
        %1161 = vmatmul.bf16.gmra.mxu0 %v831
        %v1162 = vpop.f32.mrf.mxu0
        %v1163 = vadd.f32 %v1144, %v1162
        %v1164 = vpop.f32.mrf.mxu0
        %v1165 = vadd.f32 %v1146, %v1164
        %1166 = vmatmul.bf16.gmra.mxu0 %v835
        %v1167 = vpop.f32.mrf.mxu0
        %v1168 = vadd.f32 %v1149, %v1167
        %v1169 = vpop.f32.mrf.mxu0
        %v1170 = vadd.f32 %v1151, %v1169
        %1171 = vdwg.mxu0
        %1172 = vst [vmem:[%s231] sm:$0xff] %v1163
        %1173 = vst [vmem:[%s231 + $0x8] sm:$0xff] %v1165
        %1174 = vst [vmem:[%s231 + $0x10] sm:$0xff] %v1168
        %1175 = vst [vmem:[%s231 + $0x18] sm:$0xff] %v1170
        %s1176 = sand.u32 %s134, 1
        %s1177 = sand.u32 %s134, 1
        %s1178 = smul.addr %s1177, 32
        %s1179 = scalar_lea.vmem [#allocation2], %s1178
        // Predicated region
        $region41: #{embedding_net_forward_pallas.1} parent=39 // pred_check
          %p1180 = pneg %p144
        $region42: #{embedding_net_forward_pallas.1} parent=39 // pred_check_branch
          %1182 = sbr.rel (%p1180) target = $region44
        $region43: #{embedding_net_forward_pallas.1} parent=39 // pred_region
          %s1183 = smul.u32 4, %s16
          %s1184 = ssub.s32 5, %s1183
          %p1185 = scmp.lt.s32.totalorder %s1184, 4
          %s1186 = scalar_select %p1185, %s1184, 4
          %s1187 = smul.u32 8, %s1186
          %p1188 = scmp.ne.s32.totalorder 0, %s1187
          %s1189 = smul.addr %s1183, 8
          %s1190 = scalar_lea.vmem %s5, %s1189
          // Predicated region
          $region45: #{embedding_net_forward_pallas.1} parent=43 // pred_check
            %p1191 = pneg %p1188
          $region46: #{embedding_net_forward_pallas.1} parent=43 // pred_check_branch
            %1193 = sbr.rel (%p1191) target = $region48
          $region47: #{embedding_net_forward_pallas.1} parent=43 // pred_region
            // Predicated region
            $region49: #{embedding_net_forward_pallas.1} parent=47 // pred_check
              _
            $region50: #{embedding_net_forward_pallas.1} parent=47 // pred_check_branch
              %1195 = sbr.rel (0) target = $region52
            $region51: #{embedding_net_forward_pallas.1} parent=47 // pred_region
              // Predicated region
              $region71: #{embedding_net_forward_pallas.1} parent=51 // pred_check
                _
              $region72: #{embedding_net_forward_pallas.1} parent=51 // pred_check_branch
                %1251 = sbr.rel (0) target = $region74
              $region73: #{embedding_net_forward_pallas.1} parent=51 // pred_region
                %s1252 = sshrl.u32 %s1186, 2
                // While loop
                $region75: #{embedding_net_forward_pallas.1} parent=73 // loop_pre_header
                  _
                $region76: #{embedding_net_forward_pallas.1} parent=73 // loop_header
                  %s1254 = sphi 0, %s1256
                  %p1255 = scmp.ge.s32.totalorder %s1254, %s1252
                  %s1259 = sphi 0, %s1272
                  %s1260 = sphi %s1179, %s1275
                  %s1261 = sphi %s1190, %s1276
                $region77: #{embedding_net_forward_pallas.1} parent=73 // loop_header_branch
                  %1258 = sbr.rel (%p1255) target = $region81
                $region78: #{embedding_net_forward_pallas.1} parent=73 // loop_body
                  %v1262 = vld [vmem:[%s1260] sm:$0xff]
                  %1263 = vst [vmem:[%s1261] sm:$0xff] %v1262
                  %v1264 = vld [vmem:[%s1260 + $0x8] sm:$0xff]
                  %1265 = vst [vmem:[%s1261 + $0x8] sm:$0xff] %v1264
                  %v1266 = vld [vmem:[%s1260 + $0x10] sm:$0xff]
                  %1267 = vst [vmem:[%s1261 + $0x10] sm:$0xff] %v1266
                  %v1268 = vld [vmem:[%s1260 + $0x18] sm:$0xff]
                  %1269 = vst [vmem:[%s1261 + $0x18] sm:$0xff] %v1268
                  %s1270 = sadd.s32 1, %s1259
                  %p1271 = scmp.ge.s32.totalorder %s1270, %s1252
                  %s1272 = scalar_select %p1271, 0, %s1270
                  %s1273 = smul.u32 %s1272, 32
                  %s1274 = smul.u32 %s1272, 32
                  %s1275 = scalar_lea.vmem %s1179, %s1273 [#allocation2]
                  %s1276 = scalar_lea.vmem %s1190, %s1274
                $region79: #{embedding_net_forward_pallas.1} parent=73 // loop_footer
                  %s1256 = sadd.s32 %s1254, 1
                $region80: #{embedding_net_forward_pallas.1} parent=73 // loop_footer_branch
                  %1253 = sbr.rel target = $region76
                $region81: #{embedding_net_forward_pallas.1} parent=73 // loop_exit
                  _
                %s1277 = sshrl.u32 %s1186, 2
                %s1278 = sand.u32 %s1186, 3
                %s1279 = smul.u32 %s1277, 4
                %s1280 = smul.u32 8, %s1279
                %s1281 = scalar_lea.vmem %s1179, %s1280 [#allocation2]
                %s1282 = smul.u32 8, %s1279
                %s1283 = scalar_lea.vmem %s1190, %s1282
                // While loop
                $region82: #{embedding_net_forward_pallas.1} parent=73 // loop_pre_header
                  _
                $region83: #{embedding_net_forward_pallas.1} parent=73 // loop_header
                  %s1285 = sphi 0, %s1287
                  %p1286 = scmp.ge.s32.totalorder %s1285, %s1278
                  %s1290 = sphi 0, %s1297
                  %s1291 = sphi %s1281, %s1300
                  %s1292 = sphi %s1283, %s1301
                $region84: #{embedding_net_forward_pallas.1} parent=73 // loop_header_branch
                  %1289 = sbr.rel (%p1286) target = $region88
                $region85: #{embedding_net_forward_pallas.1} parent=73 // loop_body
                  %v1293 = vld [vmem:[%s1291] sm:$0xff]
                  %1294 = vst [vmem:[%s1292] sm:$0xff] %v1293
                  %s1295 = sadd.s32 1, %s1290
                  %p1296 = scmp.ge.s32.totalorder %s1295, %s1278
                  %s1297 = scalar_select %p1296, 0, %s1295
                  %s1298 = smul.u32 %s1297, 8
                  %s1299 = smul.u32 %s1297, 8
                  %s1300 = scalar_lea.vmem %s1281, %s1298 [#allocation2]
                  %s1301 = scalar_lea.vmem %s1283, %s1299
                $region86: #{embedding_net_forward_pallas.1} parent=73 // loop_footer
                  %s1287 = sadd.s32 %s1285, 1
                $region87: #{embedding_net_forward_pallas.1} parent=73 // loop_footer_branch
                  %1284 = sbr.rel target = $region83
                $region88: #{embedding_net_forward_pallas.1} parent=73 // loop_exit
                  _
              $region74: #{embedding_net_forward_pallas.1} parent=51 // pred_fallthru
                _
              // Predicated region
              $region89: #{embedding_net_forward_pallas.1} parent=51 // pred_check
                _
              $region90: #{embedding_net_forward_pallas.1} parent=51 // pred_check_branch
                %1303 = sbr.rel target = $region92
              $region91: #{embedding_net_forward_pallas.1} parent=51 // pred_region
                _
              $region92: #{embedding_net_forward_pallas.1} parent=51 // pred_fallthru
                _
            $region52: #{embedding_net_forward_pallas.1} parent=47 // pred_fallthru
              _
            // Predicated region
            $region53: #{embedding_net_forward_pallas.1} parent=47 // pred_check
              _
            $region54: #{embedding_net_forward_pallas.1} parent=47 // pred_check_branch
              %1197 = sbr.rel target = $region56
            $region55: #{embedding_net_forward_pallas.1} parent=47 // pred_region
              %s1199 = ssub.s32 256, 1
              %s1200 = sshrl.u32 %s1186, 2
              // While loop
              $region57: #{embedding_net_forward_pallas.1} parent=55 // loop_pre_header
                _
              $region58: #{embedding_net_forward_pallas.1} parent=55 // loop_header
                %s1202 = sphi 0, %s1204
                %p1203 = scmp.ge.s32.totalorder %s1202, %s1200
                %s1207 = sphi 0, %s1220
                %s1208 = sphi %s1179, %s1223
                %s1209 = sphi %s1190, %s1224
              $region59: #{embedding_net_forward_pallas.1} parent=55 // loop_header_branch
                %1206 = sbr.rel (%p1203) target = $region63
              $region60: #{embedding_net_forward_pallas.1} parent=55 // loop_body
                %v1210 = vld [vmem:[%s1208] sm:%s1199]
                %1211 = vst [vmem:[%s1209] sm:%s1199] %v1210
                %v1212 = vld [vmem:[%s1208 + $0x8] sm:%s1199]
                %1213 = vst [vmem:[%s1209 + $0x8] sm:%s1199] %v1212
                %v1214 = vld [vmem:[%s1208 + $0x10] sm:%s1199]
                %1215 = vst [vmem:[%s1209 + $0x10] sm:%s1199] %v1214
                %v1216 = vld [vmem:[%s1208 + $0x18] sm:%s1199]
                %1217 = vst [vmem:[%s1209 + $0x18] sm:%s1199] %v1216
                %s1218 = sadd.s32 1, %s1207
                %p1219 = scmp.ge.s32.totalorder %s1218, %s1200
                %s1220 = scalar_select %p1219, 0, %s1218
                %s1221 = smul.u32 %s1220, 32
                %s1222 = smul.u32 %s1220, 32
                %s1223 = scalar_lea.vmem %s1179, %s1221 [#allocation2]
                %s1224 = scalar_lea.vmem %s1190, %s1222
              $region61: #{embedding_net_forward_pallas.1} parent=55 // loop_footer
                %s1204 = sadd.s32 %s1202, 1
              $region62: #{embedding_net_forward_pallas.1} parent=55 // loop_footer_branch
                %1201 = sbr.rel target = $region58
              $region63: #{embedding_net_forward_pallas.1} parent=55 // loop_exit
                _
              %s1225 = sshrl.u32 %s1186, 2
              %s1226 = sand.u32 %s1186, 3
              %s1227 = smul.u32 %s1225, 4
              %s1228 = smul.u32 8, %s1227
              %s1229 = scalar_lea.vmem %s1179, %s1228 [#allocation2]
              %s1230 = smul.u32 8, %s1227
              %s1231 = scalar_lea.vmem %s1190, %s1230
              // While loop
              $region64: #{embedding_net_forward_pallas.1} parent=55 // loop_pre_header
                _
              $region65: #{embedding_net_forward_pallas.1} parent=55 // loop_header
                %s1233 = sphi 0, %s1235
                %p1234 = scmp.ge.s32.totalorder %s1233, %s1226
                %s1238 = sphi 0, %s1245
                %s1239 = sphi %s1229, %s1248
                %s1240 = sphi %s1231, %s1249
              $region66: #{embedding_net_forward_pallas.1} parent=55 // loop_header_branch
                %1237 = sbr.rel (%p1234) target = $region70
              $region67: #{embedding_net_forward_pallas.1} parent=55 // loop_body
                %v1241 = vld [vmem:[%s1239] sm:%s1199]
                %1242 = vst [vmem:[%s1240] sm:%s1199] %v1241
                %s1243 = sadd.s32 1, %s1238
                %p1244 = scmp.ge.s32.totalorder %s1243, %s1226
                %s1245 = scalar_select %p1244, 0, %s1243
                %s1246 = smul.u32 %s1245, 8
                %s1247 = smul.u32 %s1245, 8
                %s1248 = scalar_lea.vmem %s1229, %s1246 [#allocation2]
                %s1249 = scalar_lea.vmem %s1231, %s1247
              $region68: #{embedding_net_forward_pallas.1} parent=55 // loop_footer
                %s1235 = sadd.s32 %s1233, 1
              $region69: #{embedding_net_forward_pallas.1} parent=55 // loop_footer_branch
                %1232 = sbr.rel target = $region65
              $region70: #{embedding_net_forward_pallas.1} parent=55 // loop_exit
                _
            $region56: #{embedding_net_forward_pallas.1} parent=47 // pred_fallthru
              _
          $region48: #{embedding_net_forward_pallas.1} parent=43 // pred_fallthru
            _
          %1304 = vnop
        $region44: #{embedding_net_forward_pallas.1} parent=39 // pred_fallthru
          _
      $region40: #{embedding_net_forward_pallas.1} parent=5 // pred_fallthru
        _
      %p1305 = scmp.le.s32.totalorder 2, %s11
      // Predicated region
      $region93: #{embedding_net_forward_pallas.1} parent=5 // pred_check
        %p1306 = pneg %p1305
      $region94: #{embedding_net_forward_pallas.1} parent=5 // pred_check_branch
        %1308 = sbr.rel (%p1306) target = $region96
      $region95: #{embedding_net_forward_pallas.1} parent=5 // pred_region
        %s1309 = ssub.s32 %s11, 2
        // Predicated region
        $region97: #{embedding_net_forward_pallas.1} parent=95 // pred_check
          %p1310 = pneg %p150
        $region98: #{embedding_net_forward_pallas.1} parent=95 // pred_check_branch
          %1312 = sbr.rel (%p1310) target = $region100
        $region99: #{embedding_net_forward_pallas.1} parent=95 // pred_region
          %s1313 = sand.u32 %s135, 1
          %s1314 = sand.u32 %s135, 1
          %s1315 = smul.addr %s1314, 32
          %s1316 = scalar_lea.vmem [#allocation2], %s1315
        $region100: #{embedding_net_forward_pallas.1} parent=95 // pred_fallthru
          _
      $region96: #{embedding_net_forward_pallas.1} parent=5 // pred_fallthru
        _
    $region6: #{embedding_net_forward_pallas.1} parent=1 // loop_footer
      %s15 = sadd.s32 1, %s11
    $region7: #{embedding_net_forward_pallas.1} parent=1 // loop_footer_branch
      %10 = sbr.rel target = $region3
    $region8: #{embedding_net_forward_pallas.1} parent=1 // loop_exit
      _

</llo_original>
